<compile_context>
chip_gen: v6e
topology: v6e:2x2x1
jax: 0.10.0
libtpu: 0.0.40
codegen_flags: <defaults>
</compile_context>

<pallas_src>
import functools

import jax
import jax.numpy as jnp
from jax.experimental import pallas as pl
from jax.experimental.pallas import tpu as pltpu

EPS = 1e-5  # nn.BatchNorm2d default


def conv_stats_kernel(x_ref, w_ref, y_ref, s_ref, q_ref):
    """Pass 1: fused 3x3 conv (single K-deep matmul) + partial BN statistics.

    x_ref: (Nb, H, K_pad)      bf16  fused 3-tap row lhs, zero-padded contraction
    w_ref: (K_pad, W*Cout)     bf16  block-Toeplitz expanded conv weights
    y_ref: (Nb, H, W*Cout)     bf16  conv output, lane-dense, channel-major lanes
    s_ref: (1, 1, W*Cout)      f32   per-block partial sum   (per lane)
    q_ref: (1, 1, W*Cout)      f32   per-block partial sumsq (per lane)
    """
    nb, h, wco = y_ref.shape
    x = x_ref[...]                                   # (Nb, H, K_pad)
    lhs = x.reshape(nb * h, x.shape[-1])             # stacked-M (Nb*H, K_pad)
    acc = jnp.dot(lhs, w_ref[...], preferred_element_type=jnp.float32)

    y_ref[...] = acc.reshape(nb, h, wco).astype(y_ref.dtype)   # bf16 writeback
    # Partial stats from the f32 accumulator (before the bf16 cast).
    s_ref[...] = jnp.sum(acc, axis=0, keepdims=True)[None]
    q_ref[...] = jnp.sum(acc * acc, axis=0, keepdims=True)[None]


def bn_relu_nchw_kernel(y_ref, ps_ref, pq_ref, g_ref, gm_ref, bt_ref, o_ref, *,
                        inv_cnt, w_out):
    """Pass 2: finalize batch stats in-kernel, scale/shift + ReLU, emit NCHW.

    y_ref:  (Nb, H, W*Cout)     bf16  conv output (channel-major lanes)
    ps_ref: (n_blk, 1, W*Cout)  f32   per-block partial sums
    pq_ref: (n_blk, 1, W*Cout)  f32   per-block partial sumsqs
    g_ref:  (W*Cout, W*Cout)    f32   block-diag 0/1 group-sum-and-broadcast matrix
    gm_ref: (1, W*Cout)         f32   gamma broadcast onto (c, w) lanes
    bt_ref: (1, W*Cout)         f32   beta  broadcast onto (c, w) lanes
    o_ref:  (Nb, Cout, H, W)    f32   final NCHW output block
    """
    cout = o_ref.shape[1]

    # ---- finalize BN statistics (tiny; redundantly recomputed per grid step) ----
    ps = jnp.sum(ps_ref[...], axis=0)                              # (1, W*Cout)
    pq = jnp.sum(pq_ref[...], axis=0)
    ch_sum = jnp.dot(ps, g_ref[...], preferred_element_type=jnp.float32)
    ch_sq = jnp.dot(pq, g_ref[...], preferred_element_type=jnp.float32)
    mean = ch_sum * inv_cnt
    var = jnp.maximum(ch_sq * inv_cnt - mean * mean, 0.0)          # biased, as PyTorch BN
    inv_std = jax.lax.rsqrt(var + EPS)
    scale = gm_ref[...] * inv_std                                  # (1, W*Cout)
    shift = bt_ref[...] - mean * scale

    # ---- normalize + ReLU on the lane-dense tile ----
    z = jnp.maximum(y_ref[...].astype(jnp.float32) * scale[None] + shift[None],
                    0.0)                                           # (Nb, H, W*Cout)

    # ---- scatter channel-major lane slabs straight into the NCHW block ----
    for c in range(cout):                                          # static unroll
        o_ref[:, c, :, :] = z[:, :, c * w_out:(c + 1) * w_out]


def _expand_weight_fused(w_hwio, W, k_pad):
    """(3, 3, Cin, Cout) -> (k_pad, Cout*W) block-Toeplitz weights (fused taps).

    Row index k = tap*(W+2)*Cin + wp*Cin + ci over the fused 3-row lhs, column
    index j = c*W + w (channel-major lanes); entry is w[tap, wp-w, ci, c] when
    0 <= wp-w <= 2 else 0.  Rows [3*(W+2)*Cin, k_pad) are zero padding.
    """
    Cin, Cout = w_hwio.shape[2], w_hwio.shape[3]
    wp = jnp.arange(W + 2)
    wo = jnp.arange(W)
    kw_rel = wp[:, None] - wo[None, :]                 # (W+2, W)
    valid = (kw_rel >= 0) & (kw_rel <= 2)
    kw_idx = jnp.clip(kw_rel, 0, 2)
    g = w_hwio[:, kw_idx]                              # (3, W+2, W, Cin, Cout)
    g = jnp.where(valid[None, :, :, None, None], g, 0.0)
    g = g.transpose(0, 1, 3, 4, 2)                     # (3, W+2, Cin, Cout, W)
    w_big = g.reshape(3 * (W + 2) * Cin, Cout * W)
    k_real = 3 * (W + 2) * Cin
    if k_pad > k_real:
        w_big = jnp.pad(w_big, ((0, k_pad - k_real), (0, 0)))
    return w_big


@jax.jit
def conv_batch_norm(x_nchw, weight_oihw, bias, gamma, beta):
    """Forward of ConvBatchNorm.  x_nchw: (N, Cin, H, W) f32 -> (N, Cout, H, W) f32."""
    del bias  # exactly cancelled by training-mode BN's batch-mean subtraction
    N, Cin, H, W = x_nchw.shape
    Cout = weight_oihw.shape[0]
    WCo = W * Cout
    K = 3 * (W + 2) * Cin
    K_pad = pl.cdiv(K, 128) * 128                      # unmasked lhs loads, full MXU depth

    # ---- pick batch block size Nb: MiB-scale blocks, >= 2 grid steps for v7x ----
    per_sample_bytes = H * K_pad * 2 + H * WCo * 2     # bf16 lhs + bf16 y per sample
    nb = max(1, min(N, (2 << 20) // max(per_sample_bytes, 1)))
    while nb > 1 and pl.cdiv(N, nb) < 2:
        nb -= 1
    while N % nb:
        nb -= 1
    n_blk = N // nb

    # ---- input layout glue (fused copies under jit): NCHW -> padded NHWC rows,
    #      fused 3-tap lhs, zero-pad contraction dim to K_pad, cast bf16 ----
    x_nhwc = jnp.transpose(x_nchw, (0, 2, 3, 1))
    x_pad = jnp.pad(x_nhwc, ((0, 0), (1, 1), (1, 1), (0, 0)))
    x_rows = x_pad.reshape(N, H + 2, (W + 2) * Cin)
    x_lhs = jnp.concatenate(
        [x_rows[:, 0:H], x_rows[:, 1:H + 1], x_rows[:, 2:H + 2]], axis=-1)
    x_lhs = jnp.pad(x_lhs, ((0, 0), (0, 0), (0, K_pad - K))).astype(jnp.bfloat16)
    # TODO(synk): at large H*W this pre-pass is an extra HBM round trip of the
    # input; fold it into pass 1 (in-kernel concat of sublane-shifted row slices).

    w_hwio = jnp.transpose(weight_oihw, (2, 3, 1, 0)).astype(jnp.float32)
    w_big = _expand_weight_fused(w_hwio, W, K_pad).astype(jnp.bfloat16)
    # TODO(synk): w_big VMEM footprint is O(W^2 * Cin * Cout); before scaling
    # shapes, tile the W*Cout column axis with an extra grid dim (v7x: 64 MiB/TC).

    # ---- Pass 1: fused conv matmul + partial BN statistics ----
    y, psum, psq = pl.pallas_call(
        conv_stats_kernel,
        out_shape=(
            jax.ShapeDtypeStruct((N, H, WCo), jnp.bfloat16),
            jax.ShapeDtypeStruct((n_blk, 1, WCo), jnp.float32),
            jax.ShapeDtypeStruct((n_blk, 1, WCo), jnp.float32),
        ),
        grid=(n_blk,),
        in_specs=[
            pl.BlockSpec((nb, H, K_pad), lambda n: (n, 0, 0)),
            pl.BlockSpec((K_pad, WCo), lambda n: (0, 0)),
        ],
        out_specs=(
            pl.BlockSpec((nb, H, WCo), lambda n: (n, 0, 0)),
            pl.BlockSpec((1, 1, WCo), lambda n: (n, 0, 0)),
            pl.BlockSpec((1, 1, WCo), lambda n: (n, 0, 0)),
        ),
        compiler_params=pltpu.CompilerParams(
            dimension_semantics=("parallel",)),
    )(x_lhs, w_big)

    # ---- constants for in-kernel BN finalize (do not depend on pass-1 outputs) ----
    lane = jnp.arange(WCo)
    g_mat = (lane[:, None] // W == lane[None, :] // W).astype(jnp.float32)
    gamma_l = jnp.repeat(gamma.astype(jnp.float32), W).reshape(1, WCo)
    beta_l = jnp.repeat(beta.astype(jnp.float32), W).reshape(1, WCo)
    inv_cnt = 1.0 / float(N * H * W)

    # ---- Pass 2: BN finalize + scale/shift + ReLU, NCHW output straight from kernel ----
    out = pl.pallas_call(
        functools.partial(bn_relu_nchw_kernel, inv_cnt=inv_cnt, w_out=W),
        out_shape=jax.ShapeDtypeStruct((N, Cout, H, W), jnp.float32),
        grid=(n_blk,),
        in_specs=[
            pl.BlockSpec((nb, H, WCo), lambda n: (n, 0, 0)),
            pl.BlockSpec((n_blk, 1, WCo), lambda n: (0, 0, 0)),
            pl.BlockSpec((n_blk, 1, WCo), lambda n: (0, 0, 0)),
            pl.BlockSpec((WCo, WCo), lambda n: (0, 0)),
            pl.BlockSpec((1, WCo), lambda n: (0, 0)),
            pl.BlockSpec((1, WCo), lambda n: (0, 0)),
        ],
        out_specs=pl.BlockSpec((nb, Cout, H, W), lambda n: (n, 0, 0, 0)),
        compiler_params=pltpu.CompilerParams(
            dimension_semantics=("parallel",)),
    )(y, psum, psq, g_mat, gamma_l, beta_l)

    return out


def _reference(x, weight, bias, gamma, beta):
    """Pure-JAX f32 reference of the PyTorch module (training-mode BN)."""
    y = jax.lax.conv_general_dilated(
        x, weight, window_strides=(1, 1), padding=((1, 1), (1, 1)),
        dimension_numbers=("NCHW", "OIHW", "NCHW"))
    y = y + bias[None, :, None, None]
    mean = y.mean(axis=(0, 2, 3), keepdims=True)
    var = y.var(axis=(0, 2, 3), keepdims=True)          # biased
    yhat = (y - mean) * jax.lax.rsqrt(var + EPS)
    yhat = yhat * gamma[None, :, None, None] + beta[None, :, None, None]
    return jnp.maximum(yhat, 0.0)


if __name__ == "__main__":
    # Small, module-consistent shapes.
    N, Cin, Cout, H, W = 2, 4, 8, 16, 16

    key = jax.random.PRNGKey(0)
    k_x, k_w, k_b = jax.random.split(key, 3)

    x = jax.random.normal(k_x, (N, Cin, H, W), dtype=jnp.float32)

    # Deterministic parameter init (shapes per nn.Conv2d / nn.BatchNorm2d).
    fan_in = Cin * 3 * 3
    bound = 1.0 / (fan_in ** 0.5)
    weight = jax.random.uniform(k_w, (Cout, Cin, 3, 3), jnp.float32, -bound, bound)
    bias = jax.random.uniform(k_b, (Cout,), jnp.float32, -bound, bound)
    gamma = jnp.ones((Cout,), jnp.float32)   # BN weight init
    beta = jnp.zeros((Cout,), jnp.float32)   # BN bias init

    out = conv_batch_norm(x, weight, bias, gamma, beta)
    jax.block_until_ready(out)

    assert out.shape == (N, Cout, H, W)
    assert bool(jnp.all(out >= 0.0))  # ReLU output is non-negative

    # Numerical check vs. f32 reference.  Kernel uses bf16 matmul operands and a
    # bf16 intermediate, so the tolerance is correspondingly loose.
    ref = _reference(x, weight, bias, gamma, beta)
    max_err = float(jnp.max(jnp.abs(out - ref)))
    assert max_err < 1e-1, f"max abs error too large: {max_err}"

    print("KERNEL_OK")
</pallas_src>

<mosaic_0001>
module attributes {stable_mosaic.version = 11 : i64} {
  func.func @conv_stats_kernel(%arg0: i32, %arg1: memref<1x16x256xbf16, #tpu.memory_space<vmem>>, %arg2: memref<256x128xbf16, #tpu.memory_space<vmem>>, %arg3: memref<1x16x128xbf16, #tpu.memory_space<vmem>>, %arg4: memref<1x1x128xf32, #tpu.memory_space<vmem>>, %arg5: memref<1x1x128xf32, #tpu.memory_space<vmem>>) attributes {dimension_semantics = [#tpu.dimension_semantics<parallel>], iteration_bounds = array<i64: 2>, scalar_prefetch = 0 : i64, scratch_operands = 0 : i64, tpu.core_type = #tpu.core_type<tc>, window_params = [{transform_indices = @transform_0, window_bounds = array<i64: 1, 16, 256>}, {pipeline_mode = #tpu.pipeline_mode<synchronous>, transform_indices = @transform_1, window_bounds = array<i64: 256, 128>}, {transform_indices = @transform_2, window_bounds = array<i64: 1, 16, 128>}, {transform_indices = @transform_3, window_bounds = array<i64: 1, 1, 128>}, {transform_indices = @transform_4, window_bounds = array<i64: 1, 1, 128>}]} {
    %c0 = arith.constant 0 : index
    %c0_0 = arith.constant 0 : index
    %c0_1 = arith.constant 0 : index
    %0 = vector.load %arg1[%c0, %c0_0, %c0_1] : memref<1x16x256xbf16, #tpu.memory_space<vmem>>, vector<1x16x256xbf16>
    %1 = vector.shape_cast %0 : vector<1x16x256xbf16> to vector<16x256xbf16>
    %c0_2 = arith.constant 0 : index
    %c0_3 = arith.constant 0 : index
    %2 = vector.load %arg2[%c0_2, %c0_3] : memref<256x128xbf16, #tpu.memory_space<vmem>>, vector<256x128xbf16>
    %cst = arith.constant dense<0.000000e+00> : vector<16x128xf32>
    %3 = tpu.matmul %1, %2, %cst {dimension_numbers = #tpu.dot_dimension_numbers<[1], [0], [0], [1], [0, 0, 1, 1], [], []>} : vector<16x256xbf16>, vector<256x128xbf16>, vector<16x128xf32> -> vector<16x128xf32>
    %4 = vector.shape_cast %3 : vector<16x128xf32> to vector<1x16x128xf32>
    %5 = arith.truncf %4 : vector<1x16x128xf32> to vector<1x16x128xbf16>
    %c0_4 = arith.constant 0 : index
    %c0_5 = arith.constant 0 : index
    %c0_6 = arith.constant 0 : index
    %6 = vector.load %arg3[%c0_4, %c0_5, %c0_6] : memref<1x16x128xbf16, #tpu.memory_space<vmem>>, vector<1x16x128xbf16>
    tpu.vector_store %arg3[%c0_4, %c0_5, %c0_6], %5 {strides = array<i32>} : memref<1x16x128xbf16, #tpu.memory_space<vmem>>, vector<1x16x128xbf16>,
    %cst_7 = arith.constant dense<0.000000e+00> : vector<128xf32>
    %7 = vector.multi_reduction <add>, %3, %cst_7 [0] : vector<16x128xf32> to vector<128xf32>
    %8 = vector.shape_cast %7 : vector<128xf32> to vector<1x128xf32>
    %9 = vector.shape_cast %8 : vector<1x128xf32> to vector<1x1x128xf32>
    %c0_8 = arith.constant 0 : index
    %c0_9 = arith.constant 0 : index
    %c0_10 = arith.constant 0 : index
    %10 = vector.load %arg4[%c0_8, %c0_9, %c0_10] : memref<1x1x128xf32, #tpu.memory_space<vmem>>, vector<1x1x128xf32>
    tpu.vector_store %arg4[%c0_8, %c0_9, %c0_10], %9 {strides = array<i32>} : memref<1x1x128xf32, #tpu.memory_space<vmem>>, vector<1x1x128xf32>,
    %11 = arith.mulf %3, %3 : vector<16x128xf32>
    %cst_11 = arith.constant dense<0.000000e+00> : vector<128xf32>
    %12 = vector.multi_reduction <add>, %11, %cst_11 [0] : vector<16x128xf32> to vector<128xf32>
    %13 = vector.shape_cast %12 : vector<128xf32> to vector<1x128xf32>
    %14 = vector.shape_cast %13 : vector<1x128xf32> to vector<1x1x128xf32>
    %c0_12 = arith.constant 0 : index
    %c0_13 = arith.constant 0 : index
    %c0_14 = arith.constant 0 : index
    %15 = vector.load %arg5[%c0_12, %c0_13, %c0_14] : memref<1x1x128xf32, #tpu.memory_space<vmem>>, vector<1x1x128xf32>
    tpu.vector_store %arg5[%c0_12, %c0_13, %c0_14], %14 {strides = array<i32>} : memref<1x1x128xf32, #tpu.memory_space<vmem>>, vector<1x1x128xf32>,
    return
  }
  func.func @transform_0(%arg0: i32) -> (i32, i32, i32) {
    %c0_i32 = arith.constant 0 : i32
    %c0_i32_0 = arith.constant 0 : i32
    %c0_i32_1 = arith.constant 0 : i32
    return %arg0, %c0_i32, %c0_i32_0 : i32, i32, i32
  }
  func.func @transform_1(%arg0: i32) -> (i32, i32) {
    %c0_i32 = arith.constant 0 : i32
    %c0_i32_0 = arith.constant 0 : i32
    %c0_i32_1 = arith.constant 0 : i32
    return %c0_i32, %c0_i32_0 : i32, i32
  }
  func.func @transform_2(%arg0: i32) -> (i32, i32, i32) {
    %c0_i32 = arith.constant 0 : i32
    %c0_i32_0 = arith.constant 0 : i32
    %c0_i32_1 = arith.constant 0 : i32
    return %arg0, %c0_i32, %c0_i32_0 : i32, i32, i32
  }
  func.func @transform_3(%arg0: i32) -> (i32, i32, i32) {
    %c0_i32 = arith.constant 0 : i32
    %c0_i32_0 = arith.constant 0 : i32
    %c0_i32_1 = arith.constant 0 : i32
    return %arg0, %c0_i32, %c0_i32_0 : i32, i32, i32
  }
  func.func @transform_4(%arg0: i32) -> (i32, i32, i32) {
    %c0_i32 = arith.constant 0 : i32
    %c0_i32_0 = arith.constant 0 : i32
    %c0_i32_1 = arith.constant 0 : i32
    return %arg0, %c0_i32, %c0_i32_0 : i32, i32, i32
  }
}

module attributes {stable_mosaic.version = 11 : i64} {
  func.func @bn_relu_nchw_kernel(%arg0: i32, %arg1: memref<1x16x128xbf16, #tpu.memory_space<vmem>>, %arg2: memref<2x1x128xf32, #tpu.memory_space<vmem>>, %arg3: memref<2x1x128xf32, #tpu.memory_space<vmem>>, %arg4: memref<128x128xf32, #tpu.memory_space<vmem>>, %arg5: memref<1x128xf32, #tpu.memory_space<vmem>>, %arg6: memref<1x128xf32, #tpu.memory_space<vmem>>, %arg7: memref<1x8x16x16xf32, #tpu.memory_space<vmem>>) attributes {dimension_semantics = [#tpu.dimension_semantics<parallel>], iteration_bounds = array<i64: 2>, scalar_prefetch = 0 : i64, scratch_operands = 0 : i64, tpu.core_type = #tpu.core_type<tc>, window_params = [{transform_indices = @transform_0, window_bounds = array<i64: 1, 16, 128>}, {pipeline_mode = #tpu.pipeline_mode<synchronous>, transform_indices = @transform_1, window_bounds = array<i64: 2, 1, 128>}, {pipeline_mode = #tpu.pipeline_mode<synchronous>, transform_indices = @transform_2, window_bounds = array<i64: 2, 1, 128>}, {pipeline_mode = #tpu.pipeline_mode<synchronous>, transform_indices = @transform_3, window_bounds = array<i64: 128, 128>}, {pipeline_mode = #tpu.pipeline_mode<synchronous>, transform_indices = @transform_4, window_bounds = array<i64: 1, 128>}, {pipeline_mode = #tpu.pipeline_mode<synchronous>, transform_indices = @transform_5, window_bounds = array<i64: 1, 128>}, {transform_indices = @transform_6, window_bounds = array<i64: 1, 8, 16, 16>}]} {
    %c0 = arith.constant 0 : index
    %c0_0 = arith.constant 0 : index
    %c0_1 = arith.constant 0 : index
    %0 = vector.load %arg2[%c0, %c0_0, %c0_1] : memref<2x1x128xf32, #tpu.memory_space<vmem>>, vector<2x1x128xf32>
    %cst = arith.constant dense<0.000000e+00> : vector<1x128xf32>
    %1 = vector.multi_reduction <add>, %0, %cst [0] : vector<2x1x128xf32> to vector<1x128xf32>
    %c0_2 = arith.constant 0 : index
    %c0_3 = arith.constant 0 : index
    %c0_4 = arith.constant 0 : index
    %2 = vector.load %arg3[%c0_2, %c0_3, %c0_4] : memref<2x1x128xf32, #tpu.memory_space<vmem>>, vector<2x1x128xf32>
    %cst_5 = arith.constant dense<0.000000e+00> : vector<1x128xf32>
    %3 = vector.multi_reduction <add>, %2, %cst_5 [0] : vector<2x1x128xf32> to vector<1x128xf32>
    %c0_6 = arith.constant 0 : index
    %c0_7 = arith.constant 0 : index
    %4 = vector.load %arg4[%c0_6, %c0_7] : memref<128x128xf32, #tpu.memory_space<vmem>>, vector<128x128xf32>
    %cst_8 = arith.constant dense<0.000000e+00> : vector<1x128xf32>
    %5 = tpu.matmul %1, %4, %cst_8 {dimension_numbers = #tpu.dot_dimension_numbers<[1], [0], [0], [1], [0, 0, 1, 1], [], []>} : vector<1x128xf32>, vector<128x128xf32>, vector<1x128xf32> -> vector<1x128xf32>
    %c0_9 = arith.constant 0 : index
    %c0_10 = arith.constant 0 : index
    %6 = vector.load %arg4[%c0_9, %c0_10] : memref<128x128xf32, #tpu.memory_space<vmem>>, vector<128x128xf32>
    %cst_11 = arith.constant dense<0.000000e+00> : vector<1x128xf32>
    %7 = tpu.matmul %3, %6, %cst_11 {dimension_numbers = #tpu.dot_dimension_numbers<[1], [0], [0], [1], [0, 0, 1, 1], [], []>} : vector<1x128xf32>, vector<128x128xf32>, vector<1x128xf32> -> vector<1x128xf32>
    %cst_12 = arith.constant 0.001953125 : f32
    %8 = vector.broadcast %cst_12 : f32 to vector<1x128xf32>
    %9 = arith.mulf %5, %8 : vector<1x128xf32>
    %cst_13 = arith.constant 0.001953125 : f32
    %10 = vector.broadcast %cst_13 : f32 to vector<1x128xf32>
    %11 = arith.mulf %7, %10 : vector<1x128xf32>
    %12 = arith.mulf %9, %9 : vector<1x128xf32>
    %13 = arith.subf %11, %12 : vector<1x128xf32>
    %cst_14 = arith.constant 0.000000e+00 : f32
    %14 = vector.broadcast %cst_14 : f32 to vector<1x128xf32>
    %15 = arith.maximumf %13, %14 : vector<1x128xf32>
    %cst_15 = arith.constant 9.99999974E-6 : f32
    %16 = vector.broadcast %cst_15 : f32 to vector<1x128xf32>
    %17 = arith.addf %15, %16 : vector<1x128xf32>
    %18 = math.rsqrt %17 : vector<1x128xf32>
    %c0_16 = arith.constant 0 : index
    %c0_17 = arith.constant 0 : index
    %19 = vector.load %arg5[%c0_16, %c0_17] : memref<1x128xf32, #tpu.memory_space<vmem>>, vector<1x128xf32>
    %20 = arith.mulf %19, %18 : vector<1x128xf32>
    %c0_18 = arith.constant 0 : index
    %c0_19 = arith.constant 0 : index
    %21 = vector.load %arg6[%c0_18, %c0_19] : memref<1x128xf32, #tpu.memory_space<vmem>>, vector<1x128xf32>
    %22 = arith.mulf %9, %20 : vector<1x128xf32>
    %23 = arith.subf %21, %22 : vector<1x128xf32>
    %c0_20 = arith.constant 0 : index
    %c0_21 = arith.constant 0 : index
    %c0_22 = arith.constant 0 : index
    %24 = vector.load %arg1[%c0_20, %c0_21, %c0_22] : memref<1x16x128xbf16, #tpu.memory_space<vmem>>, vector<1x16x128xbf16>
    %25 = arith.extf %24 : vector<1x16x128xbf16> to vector<1x16x128xf32>
    %26 = vector.shape_cast %20 : vector<1x128xf32> to vector<1x1x128xf32>
    %27 = vector.broadcast %26 : vector<1x1x128xf32> to vector<1x16x128xf32>
    %28 = arith.mulf %25, %27 : vector<1x16x128xf32>
    %29 = vector.shape_cast %23 : vector<1x128xf32> to vector<1x1x128xf32>
    %30 = vector.broadcast %29 : vector<1x1x128xf32> to vector<1x16x128xf32>
    %31 = arith.addf %28, %30 : vector<1x16x128xf32>
    %cst_23 = arith.constant 0.000000e+00 : f32
    %32 = vector.broadcast %cst_23 : f32 to vector<1x16x128xf32>
    %33 = arith.maximumf %31, %32 : vector<1x16x128xf32>
    %34 = vector.extract_strided_slice %33 {offsets = [0, 0, 0], sizes = [1, 16, 16], strides = [1, 1, 1]} : vector<1x16x128xf32> to vector<1x16x16xf32>
    %c0_24 = arith.constant 0 : index
    %c0_25 = arith.constant 0 : index
    %c0_26 = arith.constant 0 : index
    %c0_27 = arith.constant 0 : index
    %35 = vector.load %arg7[%c0_24, %c0_25, %c0_26, %c0_27] : memref<1x8x16x16xf32, #tpu.memory_space<vmem>>, vector<1x1x16x16xf32>
    %36 = vector.shape_cast %35 : vector<1x1x16x16xf32> to vector<1x16x16xf32>
    %37 = vector.shape_cast %34 : vector<1x16x16xf32> to vector<1x1x16x16xf32>
    tpu.vector_store %arg7[%c0_24, %c0_25, %c0_26, %c0_27], %37 {strides = array<i32>} : memref<1x8x16x16xf32, #tpu.memory_space<vmem>>, vector<1x1x16x16xf32>,
    %38 = vector.extract_strided_slice %33 {offsets = [0, 0, 16], sizes = [1, 16, 16], strides = [1, 1, 1]} : vector<1x16x128xf32> to vector<1x16x16xf32>
    %c0_28 = arith.constant 0 : index
    %c1 = arith.constant 1 : index
    %c0_29 = arith.constant 0 : index
    %c0_30 = arith.constant 0 : index
    %39 = vector.load %arg7[%c0_28, %c1, %c0_29, %c0_30] : memref<1x8x16x16xf32, #tpu.memory_space<vmem>>, vector<1x1x16x16xf32>
    %40 = vector.shape_cast %39 : vector<1x1x16x16xf32> to vector<1x16x16xf32>
    %41 = vector.shape_cast %38 : vector<1x16x16xf32> to vector<1x1x16x16xf32>
    tpu.vector_store %arg7[%c0_28, %c1, %c0_29, %c0_30], %41 {strides = array<i32>} : memref<1x8x16x16xf32, #tpu.memory_space<vmem>>, vector<1x1x16x16xf32>,
    %42 = vector.extract_strided_slice %33 {offsets = [0, 0, 32], sizes = [1, 16, 16], strides = [1, 1, 1]} : vector<1x16x128xf32> to vector<1x16x16xf32>
    %c0_31 = arith.constant 0 : index
    %c2 = arith.constant 2 : index
    %c0_32 = arith.constant 0 : index
    %c0_33 = arith.constant 0 : index
    %43 = vector.load %arg7[%c0_31, %c2, %c0_32, %c0_33] : memref<1x8x16x16xf32, #tpu.memory_space<vmem>>, vector<1x1x16x16xf32>
    %44 = vector.shape_cast %43 : vector<1x1x16x16xf32> to vector<1x16x16xf32>
    %45 = vector.shape_cast %42 : vector<1x16x16xf32> to vector<1x1x16x16xf32>
    tpu.vector_store %arg7[%c0_31, %c2, %c0_32, %c0_33], %45 {strides = array<i32>} : memref<1x8x16x16xf32, #tpu.memory_space<vmem>>, vector<1x1x16x16xf32>,
    %46 = vector.extract_strided_slice %33 {offsets = [0, 0, 48], sizes = [1, 16, 16], strides = [1, 1, 1]} : vector<1x16x128xf32> to vector<1x16x16xf32>
    %c0_34 = arith.constant 0 : index
    %c3 = arith.constant 3 : index
    %c0_35 = arith.constant 0 : index
    %c0_36 = arith.constant 0 : index
    %47 = vector.load %arg7[%c0_34, %c3, %c0_35, %c0_36] : memref<1x8x16x16xf32, #tpu.memory_space<vmem>>, vector<1x1x16x16xf32>
    %48 = vector.shape_cast %47 : vector<1x1x16x16xf32> to vector<1x16x16xf32>
    %49 = vector.shape_cast %46 : vector<1x16x16xf32> to vector<1x1x16x16xf32>
    tpu.vector_store %arg7[%c0_34, %c3, %c0_35, %c0_36], %49 {strides = array<i32>} : memref<1x8x16x16xf32, #tpu.memory_space<vmem>>, vector<1x1x16x16xf32>,
    %50 = vector.extract_strided_slice %33 {offsets = [0, 0, 64], sizes = [1, 16, 16], strides = [1, 1, 1]} : vector<1x16x128xf32> to vector<1x16x16xf32>
    %c0_37 = arith.constant 0 : index
    %c4 = arith.constant 4 : index
    %c0_38 = arith.constant 0 : index
    %c0_39 = arith.constant 0 : index
    %51 = vector.load %arg7[%c0_37, %c4, %c0_38, %c0_39] : memref<1x8x16x16xf32, #tpu.memory_space<vmem>>, vector<1x1x16x16xf32>
    %52 = vector.shape_cast %51 : vector<1x1x16x16xf32> to vector<1x16x16xf32>
    %53 = vector.shape_cast %50 : vector<1x16x16xf32> to vector<1x1x16x16xf32>
    tpu.vector_store %arg7[%c0_37, %c4, %c0_38, %c0_39], %53 {strides = array<i32>} : memref<1x8x16x16xf32, #tpu.memory_space<vmem>>, vector<1x1x16x16xf32>,
    %54 = vector.extract_strided_slice %33 {offsets = [0, 0, 80], sizes = [1, 16, 16], strides = [1, 1, 1]} : vector<1x16x128xf32> to vector<1x16x16xf32>
    %c0_40 = arith.constant 0 : index
    %c5 = arith.constant 5 : index
    %c0_41 = arith.constant 0 : index
    %c0_42 = arith.constant 0 : index
    %55 = vector.load %arg7[%c0_40, %c5, %c0_41, %c0_42] : memref<1x8x16x16xf32, #tpu.memory_space<vmem>>, vector<1x1x16x16xf32>
    %56 = vector.shape_cast %55 : vector<1x1x16x16xf32> to vector<1x16x16xf32>
    %57 = vector.shape_cast %54 : vector<1x16x16xf32> to vector<1x1x16x16xf32>
    tpu.vector_store %arg7[%c0_40, %c5, %c0_41, %c0_42], %57 {strides = array<i32>} : memref<1x8x16x16xf32, #tpu.memory_space<vmem>>, vector<1x1x16x16xf32>,
    %58 = vector.extract_strided_slice %33 {offsets = [0, 0, 96], sizes = [1, 16, 16], strides = [1, 1, 1]} : vector<1x16x128xf32> to vector<1x16x16xf32>
    %c0_43 = arith.constant 0 : index
    %c6 = arith.constant 6 : index
    %c0_44 = arith.constant 0 : index
    %c0_45 = arith.constant 0 : index
    %59 = vector.load %arg7[%c0_43, %c6, %c0_44, %c0_45] : memref<1x8x16x16xf32, #tpu.memory_space<vmem>>, vector<1x1x16x16xf32>
    %60 = vector.shape_cast %59 : vector<1x1x16x16xf32> to vector<1x16x16xf32>
    %61 = vector.shape_cast %58 : vector<1x16x16xf32> to vector<1x1x16x16xf32>
    tpu.vector_store %arg7[%c0_43, %c6, %c0_44, %c0_45], %61 {strides = array<i32>} : memref<1x8x16x16xf32, #tpu.memory_space<vmem>>, vector<1x1x16x16xf32>,
    %62 = vector.extract_strided_slice %33 {offsets = [0, 0, 112], sizes = [1, 16, 16], strides = [1, 1, 1]} : vector<1x16x128xf32> to vector<1x16x16xf32>
    %c0_46 = arith.constant 0 : index
    %c7 = arith.constant 7 : index
    %c0_47 = arith.constant 0 : index
    %c0_48 = arith.constant 0 : index
    %63 = vector.load %arg7[%c0_46, %c7, %c0_47, %c0_48] : memref<1x8x16x16xf32, #tpu.memory_space<vmem>>, vector<1x1x16x16xf32>
    %64 = vector.shape_cast %63 : vector<1x1x16x16xf32> to vector<1x16x16xf32>
    %65 = vector.shape_cast %62 : vector<1x16x16xf32> to vector<1x1x16x16xf32>
    tpu.vector_store %arg7[%c0_46, %c7, %c0_47, %c0_48], %65 {strides = array<i32>} : memref<1x8x16x16xf32, #tpu.memory_space<vmem>>, vector<1x1x16x16xf32>,
    return
  }
  func.func @transform_0(%arg0: i32) -> (i32, i32, i32) {
    %c0_i32 = arith.constant 0 : i32
    %c0_i32_0 = arith.constant 0 : i32
    %c0_i32_1 = arith.constant 0 : i32
    return %arg0, %c0_i32, %c0_i32_0 : i32, i32, i32
  }
  func.func @transform_1(%arg0: i32) -> (i32, i32, i32) {
    %c0_i32 = arith.constant 0 : i32
    %c0_i32_0 = arith.constant 0 : i32
    %c0_i32_1 = arith.constant 0 : i32
    %c0_i32_2 = arith.constant 0 : i32
    return %c0_i32, %c0_i32_0, %c0_i32_1 : i32, i32, i32
  }
  func.func @transform_2(%arg0: i32) -> (i32, i32, i32) {
    %c0_i32 = arith.constant 0 : i32
    %c0_i32_0 = arith.constant 0 : i32
    %c0_i32_1 = arith.constant 0 : i32
    %c0_i32_2 = arith.constant 0 : i32
    return %c0_i32, %c0_i32_0, %c0_i32_1 : i32, i32, i32
  }
  func.func @transform_3(%arg0: i32) -> (i32, i32) {
    %c0_i32 = arith.constant 0 : i32
    %c0_i32_0 = arith.constant 0 : i32
    %c0_i32_1 = arith.constant 0 : i32
    return %c0_i32, %c0_i32_0 : i32, i32
  }
  func.func @transform_4(%arg0: i32) -> (i32, i32) {
    %c0_i32 = arith.constant 0 : i32
    %c0_i32_0 = arith.constant 0 : i32
    %c0_i32_1 = arith.constant 0 : i32
    return %c0_i32, %c0_i32_0 : i32, i32
  }
  func.func @transform_5(%arg0: i32) -> (i32, i32) {
    %c0_i32 = arith.constant 0 : i32
    %c0_i32_0 = arith.constant 0 : i32
    %c0_i32_1 = arith.constant 0 : i32
    return %c0_i32, %c0_i32_0 : i32, i32
  }
  func.func @transform_6(%arg0: i32) -> (i32, i32, i32, i32) {
    %c0_i32 = arith.constant 0 : i32
    %c0_i32_0 = arith.constant 0 : i32
    %c0_i32_1 = arith.constant 0 : i32
    %c0_i32_2 = arith.constant 0 : i32
    return %arg0, %c0_i32, %c0_i32_0, %c0_i32_1 : i32, i32, i32, i32
  }
}

</mosaic_0001>

<llo_original>
// kernel: conv_batch_norm.2
$region0: #{conv_batch_norm.2}
  #allocation0 [shape = 'u32[]', space=smem, size = 0x4, offset = 0x4, fixed_abs, tag = 'smem constant byte address 0x4 - core index']
  #allocation1 [shape = 'u32[144,128]{1,0:T(1,128)}', space=vmem, size = 0x12000, scoped, tag = 'internal scratch']
  %s0 = inlined_call_operand.vmem [shape: bf16[2,16,256], index: 0, kind: input, shape index: {}]
  %s1 = inlined_call_operand.vmem [shape: bf16[256,128], index: 1, kind: input, shape index: {}]
  %s2 = inlined_call_operand.vmem [shape: bf16[2,16,128], index: 2, kind: output, shape index: {0}]
  %s3 = inlined_call_operand.vmem [shape: f32[2,1,128], index: 3, kind: output, shape index: {1}]
  %s4 = inlined_call_operand.vmem [shape: f32[2,1,128], index: 4, kind: output, shape index: {2}]
  %5 = xla_tuple %s2, %s3, %s4
  %s6 = sld [smem:[#allocation0]]
  $region57: #{conv_batch_norm.2} parent=0
    _
  %s8 = ssub.s32 1, %s6
  %s9 = scalar_select 0, %s8, %s6
  loop: start=0, step=1, limit=4
  $region2: #{conv_batch_norm.2} parent=0 // loop_pre_header
    _
  $region3: #{conv_batch_norm.2} parent=0 // loop_header
    %s11 = sphi 0, %s15
    %p12 = scmp.ge.s32.totalorder %s11, 4
    %s21 = sphi 0, %s23
    %s24 = sphi 0, %s21
    %s25 = sphi 0, %s24
    %s41 = sphi 0, %s25
    %s45 = sphi 0, %s45
    %s47 = sphi 0, %s45
    %s48 = sphi 0, %s47
    %s62 = sphi 0, %s48
    %s68 = sphi 0, %s70
    %s71 = sphi 0, %s68
    %s72 = sphi 0, %s71
    %s88 = sphi 0, %s72
    %s94 = sphi 0, %s96
    %s97 = sphi 0, %s94
    %s98 = sphi 0, %s97
    %s114 = sphi 0, %s98
    %s120 = sphi 0, %s122
    %s123 = sphi 0, %s120
    %s124 = sphi 0, %s123
    %s140 = sphi 0, %s124
  $region4: #{conv_batch_norm.2} parent=0 // loop_header_branch
    %14 = sbr.rel (%p12) target = $region8
  $region5: #{conv_batch_norm.2} parent=0 // loop_body
    %s16 = ssub.s32 %s11, 1
    %s17 = ssub.s32 %s11, 2
    %s18 = sadd.s32 %s11, 1
    %s19 = ssub.s32 %s11, %s18
    %p20 = scmp.eq.s32.totalorder %s19, 0
    %s22 = sadd.s32 %s21, 1
    %s23 = scalar_select %p20, %s21, %s22
    %p26 = pneg %p20
    %p27 = scmp.eq.s32.totalorder %s11, 1
    %p28 = por %p26, %p27
    %p29 = scmp.ne.s32.totalorder %s21, %s24
    %p30 = scmp.eq.s32.totalorder %s11, 0
    %p31 = por %p29, %p30
    %p32 = scmp.ne.s32.totalorder %s21, %s24
    %p33 = scmp.eq.s32.totalorder %s16, 1
    %p34 = por %p32, %p33
    %p35 = scmp.ne.s32.totalorder %s24, %s25
    %p36 = scmp.eq.s32.totalorder %s16, 0
    %p37 = por %p35, %p36
    %p38 = scmp.ne.s32.totalorder %s24, %s25
    %p39 = scmp.eq.s32.totalorder %s17, 1
    %p40 = por %p38, %p39
    %p42 = scmp.ne.s32.totalorder %s25, %s41
    %p43 = scmp.eq.s32.totalorder %s17, 0
    %p44 = por %p42, %p43
    %s46 = sadd.s32 %s45, 1
    %p49 = scmp.eq.s32.totalorder %s11, 1
    %p50 = scmp.ne.s32.totalorder %s45, %s47
    %p51 = scmp.eq.s32.totalorder %s11, 0
    %p52 = por %p50, %p51
    %p53 = scmp.ne.s32.totalorder %s45, %s47
    %p54 = scmp.eq.s32.totalorder %s16, 1
    %p55 = por %p53, %p54
    %p56 = scmp.ne.s32.totalorder %s47, %s48
    %p57 = scmp.eq.s32.totalorder %s16, 0
    %p58 = por %p56, %p57
    %p59 = scmp.ne.s32.totalorder %s47, %s48
    %p60 = scmp.eq.s32.totalorder %s17, 1
    %p61 = por %p59, %p60
    %p63 = scmp.ne.s32.totalorder %s48, %s62
    %p64 = scmp.eq.s32.totalorder %s17, 0
    %p65 = por %p63, %p64
    %s66 = ssub.s32 %s11, %s18
    %p67 = scmp.eq.s32.totalorder %s66, 0
    %s69 = sadd.s32 %s68, 1
    %s70 = scalar_select %p67, %s68, %s69
    %p73 = pneg %p67
    %p74 = scmp.eq.s32.totalorder %s11, 1
    %p75 = por %p73, %p74
    %p76 = scmp.ne.s32.totalorder %s68, %s71
    %p77 = scmp.eq.s32.totalorder %s11, 0
    %p78 = por %p76, %p77
    %p79 = scmp.ne.s32.totalorder %s68, %s71
    %p80 = scmp.eq.s32.totalorder %s16, 1
    %p81 = por %p79, %p80
    %p82 = scmp.ne.s32.totalorder %s71, %s72
    %p83 = scmp.eq.s32.totalorder %s16, 0
    %p84 = por %p82, %p83
    %p85 = scmp.ne.s32.totalorder %s71, %s72
    %p86 = scmp.eq.s32.totalorder %s17, 1
    %p87 = por %p85, %p86
    %p89 = scmp.ne.s32.totalorder %s72, %s88
    %p90 = scmp.eq.s32.totalorder %s17, 0
    %p91 = por %p89, %p90
    %s92 = ssub.s32 %s11, %s18
    %p93 = scmp.eq.s32.totalorder %s92, 0
    %s95 = sadd.s32 %s94, 1
    %s96 = scalar_select %p93, %s94, %s95
    %p99 = pneg %p93
    %p100 = scmp.eq.s32.totalorder %s11, 1
    %p101 = por %p99, %p100
    %p102 = scmp.ne.s32.totalorder %s94, %s97
    %p103 = scmp.eq.s32.totalorder %s11, 0
    %p104 = por %p102, %p103
    %p105 = scmp.ne.s32.totalorder %s94, %s97
    %p106 = scmp.eq.s32.totalorder %s16, 1
    %p107 = por %p105, %p106
    %p108 = scmp.ne.s32.totalorder %s97, %s98
    %p109 = scmp.eq.s32.totalorder %s16, 0
    %p110 = por %p108, %p109
    %p111 = scmp.ne.s32.totalorder %s97, %s98
    %p112 = scmp.eq.s32.totalorder %s17, 1
    %p113 = por %p111, %p112
    %p115 = scmp.ne.s32.totalorder %s98, %s114
    %p116 = scmp.eq.s32.totalorder %s17, 0
    %p117 = por %p115, %p116
    %s118 = ssub.s32 %s11, %s18
    %p119 = scmp.eq.s32.totalorder %s118, 0
    %s121 = sadd.s32 %s120, 1
    %s122 = scalar_select %p119, %s120, %s121
    %p125 = pneg %p119
    %p126 = scmp.eq.s32.totalorder %s11, 1
    %p127 = por %p125, %p126
    %p128 = scmp.ne.s32.totalorder %s120, %s123
    %p129 = scmp.eq.s32.totalorder %s11, 0
    %p130 = por %p128, %p129
    %p131 = scmp.ne.s32.totalorder %s120, %s123
    %p132 = scmp.eq.s32.totalorder %s16, 1
    %p133 = por %p131, %p132
    %p134 = scmp.ne.s32.totalorder %s123, %s124
    %p135 = scmp.eq.s32.totalorder %s16, 0
    %p136 = por %p134, %p135
    %p137 = scmp.ne.s32.totalorder %s123, %s124
    %p138 = scmp.eq.s32.totalorder %s17, 1
    %p139 = por %p137, %p138
    %p141 = scmp.ne.s32.totalorder %s124, %s140
    %p142 = scmp.eq.s32.totalorder %s17, 0
    %p143 = por %p141, %p142
    %p144 = scmp.le.s32.totalorder 1, %s11
    %p145 = scmp.lt.s32.totalorder %s11, 3
    %p146 = pnand %p144, %p145
    %p147 = pneg %p146
    // Predicated region
    $region9: #{conv_batch_norm.2} parent=5 // pred_check
      _
    $region10: #{conv_batch_norm.2} parent=5 // pred_check_branch
      %149 = sbr.rel (%p146) target = $region12
    $region11: #{conv_batch_norm.2} parent=5 // pred_region
      %s150 = ssub.s32 %s11, 1
      // Predicated region
      $region13: #{conv_batch_norm.2} parent=11 // pred_check
        %p151 = pneg %p58
      $region14: #{conv_batch_norm.2} parent=11 // pred_check_branch
        %153 = sbr.rel (%p151) target = $region16
      $region15: #{conv_batch_norm.2} parent=11 // pred_region
        _
      $region16: #{conv_batch_norm.2} parent=11 // pred_fallthru
        _
    $region12: #{conv_batch_norm.2} parent=5 // pred_fallthru
      _
    %p154 = scmp.lt.s32.totalorder %s11, 2
    // Predicated region
    $region17: #{conv_batch_norm.2} parent=5 // pred_check
      %p155 = pneg %p154
    $region18: #{conv_batch_norm.2} parent=5 // pred_check_branch
      %157 = sbr.rel (%p155) target = $region20
    $region19: #{conv_batch_norm.2} parent=5 // pred_region
      // Predicated region
      $region21: #{conv_batch_norm.2} parent=19 // pred_check
        %p158 = pneg %p31
      $region22: #{conv_batch_norm.2} parent=19 // pred_check_branch
        %160 = sbr.rel (%p158) target = $region24
      $region23: #{conv_batch_norm.2} parent=19 // pred_region
        %p161 = scmp.lt.s32.totalorder %s11, 1
        %s162 = scalar_select %p161, %s11, 1
        %s163 = smul.addr %s162, 4
        %s164 = smul.addr %s163, 4
        %s165 = scalar_lea.vmem %s0, %s164
      $region24: #{conv_batch_norm.2} parent=19 // pred_fallthru
        _
    $region20: #{conv_batch_norm.2} parent=5 // pred_fallthru
      _
    %p166 = scmp.le.s32.totalorder 1, %s11
    %p167 = scmp.lt.s32.totalorder %s11, 3
    %p168 = pnand %p166, %p167
    %p169 = pneg %p168
    // Predicated region
    $region25: #{conv_batch_norm.2} parent=5 // pred_check
      _
    $region26: #{conv_batch_norm.2} parent=5 // pred_check_branch
      %171 = sbr.rel (%p168) target = $region28
    $region27: #{conv_batch_norm.2} parent=5 // pred_region
      %s172 = ssub.s32 %s11, 1
      %p173 = scmp.lt.s32.totalorder %s16, 1
      %s174 = scalar_select %p173, %s16, 1
      %s175 = smul.addr %s174, 4
      %s176 = smul.addr %s175, 4
      %s177 = scalar_lea.vmem %s0, %s176
      %p178 = pneg %p37
      %p179 = pneg %p34
      %p180 = pneg %p58
      %p181 = pneg %p55
      %p182 = pneg %p84
      %p183 = pneg %p81
      %p184 = scmp.lt.s32.totalorder %s16, 1
      %s185 = scalar_select %p184, %s16, 1
      %s186 = smul.addr %s185, 2
      %s187 = smul.addr %s186, 4
      %s188 = scalar_lea.vmem %s2, %s187
      %p189 = pneg %p110
      %p190 = pneg %p107
      %p191 = scmp.lt.s32.totalorder %s16, 1
      %s192 = scalar_select %p191, %s16, 1
      %s193 = scalar_lea.vmem %s3, %s192
      %p194 = pneg %p136
      %p195 = pneg %p133
      %p196 = scmp.lt.s32.totalorder %s16, 1
      %s197 = scalar_select %p196, %s16, 1
      %s198 = scalar_lea.vmem %s4, %s197
      %p199 = scmp.lt.s32.totalorder %s16, 1
      %s200 = scalar_select %p199, %s16, 1
      %s201 = smul.addr %s200, 4
      %s202 = smul.addr %s201, 4
      %s203 = scalar_lea.vmem %s0, %s202
      %p204 = scmp.lt.s32.totalorder %s16, 1
      %s205 = scalar_select %p204, %s16, 1
      %s206 = smul.addr %s205, 2
      %s207 = smul.addr %s206, 4
      %s208 = scalar_lea.vmem %s2, %s207
      %p209 = scmp.lt.s32.totalorder %s16, 1
      %s210 = scalar_select %p209, %s16, 1
      %s211 = scalar_lea.vmem %s3, %s210
      %p212 = scmp.lt.s32.totalorder %s16, 1
      %s213 = scalar_select %p212, %s16, 1
      %s214 = scalar_lea.vmem %s4, %s213
      %v216 = vld [vmem:[%s203] sm:$0xff]
      %v217 = vld [vmem:[%s203 + $0x8] sm:$0xff]
      %v218 = vld [vmem:[%s1] sm:$0xf]
      %v219 = vld [vmem:[%s1 + $0x4] sm:$0xf]
      %v220 = vld [vmem:[%s1 + $0x8] sm:$0xf]
      %v221 = vld [vmem:[%s1 + $0xc] sm:$0xf]
      %v222 = vld [vmem:[%s1 + $0x10] sm:$0xf]
      %v223 = vld [vmem:[%s1 + $0x14] sm:$0xf]
      %v224 = vld [vmem:[%s1 + $0x18] sm:$0xf]
      %v225 = vld [vmem:[%s1 + $0x1c] sm:$0xf]
      %v226 = vld [vmem:[%s1 + $0x20] sm:$0xf]
      %v227 = vld [vmem:[%s1 + $0x24] sm:$0xf]
      %v228 = vld [vmem:[%s1 + $0x28] sm:$0xf]
      %v229 = vld [vmem:[%s1 + $0x2c] sm:$0xf]
      %v230 = vld [vmem:[%s1 + $0x30] sm:$0xf]
      %v231 = vld [vmem:[%s1 + $0x34] sm:$0xf]
      %v232 = vld [vmem:[%s1 + $0x38] sm:$0xf]
      %v233 = vld [vmem:[%s1 + $0x3c] sm:$0xf]
      %v234 = vld [vmem:[%s1 + $0x40] sm:$0xf]
      %v235 = vld [vmem:[%s1 + $0x44] sm:$0xf]
      %v236 = vld [vmem:[%s1 + $0x48] sm:$0xf]
      %v237 = vld [vmem:[%s1 + $0x4c] sm:$0xf]
      %v238 = vld [vmem:[%s1 + $0x50] sm:$0xf]
      %v239 = vld [vmem:[%s1 + $0x54] sm:$0xf]
      %v240 = vld [vmem:[%s1 + $0x58] sm:$0xf]
      %v241 = vld [vmem:[%s1 + $0x5c] sm:$0xf]
      %v242 = vld [vmem:[%s1 + $0x60] sm:$0xf]
      %v243 = vld [vmem:[%s1 + $0x64] sm:$0xf]
      %v244 = vld [vmem:[%s1 + $0x68] sm:$0xf]
      %v245 = vld [vmem:[%s1 + $0x6c] sm:$0xf]
      %v246 = vld [vmem:[%s1 + $0x70] sm:$0xf]
      %v247 = vld [vmem:[%s1 + $0x74] sm:$0xf]
      %v248 = vld [vmem:[%s1 + $0x78] sm:$0xf]
      %v249 = vld [vmem:[%s1 + $0x7c] sm:$0xf]
      %v252 = vunpack.c.l.b16 %v216
      %v253 = vunpack.c.h.b16 %v216
      %v254 = vunpack.c.l.b16 %v217
      %v255 = vunpack.c.h.b16 %v217
      %v256 = vpack.c.b16 %v254, %v252
      %v257 = vpack.c.b16 %v255, %v253
      %v292 = vunpack.c.l.b16 %v218
      %v293 = vunpack.c.l.b16 %v219
      %v294 = vunpack.c.l.b16 %v220
      %v295 = vunpack.c.l.b16 %v221
      %v296 = vunpack.c.l.b16 %v222
      %v297 = vunpack.c.l.b16 %v223
      %v298 = vunpack.c.l.b16 %v224
      %v299 = vunpack.c.l.b16 %v225
      %v300 = vunpack.c.l.b16 %v226
      %v301 = vunpack.c.l.b16 %v227
      %v302 = vunpack.c.l.b16 %v228
      %v303 = vunpack.c.l.b16 %v229
      %v304 = vunpack.c.l.b16 %v230
      %v305 = vunpack.c.l.b16 %v231
      %v306 = vunpack.c.l.b16 %v232
      %v307 = vunpack.c.l.b16 %v233
      %v308 = vunpack.c.l.b16 %v234
      %v309 = vunpack.c.l.b16 %v235
      %v310 = vunpack.c.l.b16 %v236
      %v311 = vunpack.c.l.b16 %v237
      %v312 = vunpack.c.l.b16 %v238
      %v313 = vunpack.c.l.b16 %v239
      %v314 = vunpack.c.l.b16 %v240
      %v315 = vunpack.c.l.b16 %v241
      %v316 = vunpack.c.l.b16 %v242
      %v317 = vunpack.c.l.b16 %v243
      %v318 = vunpack.c.l.b16 %v244
      %v319 = vunpack.c.l.b16 %v245
      %v320 = vunpack.c.l.b16 %v246
      %v321 = vunpack.c.l.b16 %v247
      %v322 = vunpack.c.l.b16 %v248
      %v323 = vunpack.c.l.b16 %v249
      %v324 = vpack.c.b16 %v293, %v292
      %v325 = vpack.c.b16 %v295, %v294
      %v326 = vpack.c.b16 %v297, %v296
      %v327 = vpack.c.b16 %v299, %v298
      %v328 = vpack.c.b16 %v301, %v300
      %v329 = vpack.c.b16 %v303, %v302
      %v330 = vpack.c.b16 %v305, %v304
      %v331 = vpack.c.b16 %v307, %v306
      %v332 = vpack.c.b16 %v309, %v308
      %v333 = vpack.c.b16 %v311, %v310
      %v334 = vpack.c.b16 %v313, %v312
      %v335 = vpack.c.b16 %v315, %v314
      %v336 = vpack.c.b16 %v317, %v316
      %v337 = vpack.c.b16 %v319, %v318
      %v338 = vpack.c.b16 %v321, %v320
      %v339 = vpack.c.b16 %v323, %v322
      %356 = vmatprep.subr.bf16.mxu0 0
      %357 = vmatpush1.bf16.msra.mxu0 %v331
      %358 = vmatprep.subr.bf16.mxu0 0
      %359 = vmatpush1.bf16.msra.mxu0 %v330
      %360 = vmatprep.subr.bf16.mxu0 0
      %361 = vmatpush1.bf16.msra.mxu0 %v329
      %362 = vmatprep.subr.bf16.mxu0 0
      %363 = vmatpush1.bf16.msra.mxu0 %v328
      %364 = vmatprep.subr.bf16.mxu0 0
      %365 = vmatpush1.bf16.msra.mxu0 %v327
      %366 = vmatprep.subr.bf16.mxu0 0
      %367 = vmatpush1.bf16.msra.mxu0 %v326
      %368 = vmatprep.subr.bf16.mxu0 0
      %369 = vmatpush1.bf16.msra.mxu0 %v325
      %370 = vmatprep.subr.bf16.mxu0 0
      %371 = vmatpush1.bf16.msra.mxu0 %v324
      %372 = vmatprep.subr.bf16.mxu0 0
      %373 = vmatpush2.bf16.msra.mxu0 %v339
      %374 = vmatprep.subr.bf16.mxu0 0
      %375 = vmatpush2.bf16.msra.mxu0 %v338
      %376 = vmatprep.subr.bf16.mxu0 0
      %377 = vmatpush2.bf16.msra.mxu0 %v337
      %378 = vmatprep.subr.bf16.mxu0 0
      %379 = vmatpush2.bf16.msra.mxu0 %v336
      %380 = vmatprep.subr.bf16.mxu0 0
      %381 = vmatpush2.bf16.msra.mxu0 %v335
      %382 = vmatprep.subr.bf16.mxu0 0
      %383 = vmatpush2.bf16.msra.mxu0 %v334
      %384 = vmatprep.subr.bf16.mxu0 0
      %385 = vmatpush2.bf16.msra.mxu0 %v333
      %386 = vmatprep.subr.bf16.mxu0 0
      %387 = vmatpush2.bf16.msra.mxu0 %v332
      %388 = vmatprep.mubr.bf16.mxu0 %v257
      %389 = vmatmul.mubr.bf16.gmra.mxu0 %v256
      %v390 = vpop.f32.mrf.mxu0
      %v391 = vadd.f32 0.0, %v390
      %v392 = vpop.f32.mrf.mxu0
      %v393 = vpop.f32.mrf.mxu0
      %v394 = vadd.f32 0.0, %v393
      %v395 = vpop.f32.mrf.mxu0
      %396 = vdwg.mxu0
      %v397 = vpack.c.bf16 %v394, %v391
      %v399 = vunpack.c.l.b16 %v397
      %v400 = vunpack.c.h.b16 %v397
      %v401 = vpack.c.b16 %v399, %v399
      %v402 = vpack.c.b16 %v400, %v400
      %405 = vst [vmem:[%s208] sm:$0xf] %v401
      %406 = vst [vmem:[%s208 + $0x4] sm:$0xf] %v402
      %v407 = vadd.f32 %v391, %v394
      %v408 = vrot.slane %v407, 4
      %v409 = vadd.f32 %v407, %v408
      %v410 = vrot.slane %v409, 2
      %v411 = vadd.f32 %v409, %v410
      %v412 = vrot.slane %v411, 1
      %v413 = vadd.f32 %v411, %v412
      %414 = vst [vmem:[%s211] sm:$0x1] %v413
      %v415 = vmul.f32 %v391, %v391
      %v416 = vmul.f32 %v394, %v394
      %v417 = vadd.f32 %v415, %v416
      %v418 = vrot.slane %v417, 4
      %v419 = vadd.f32 %v417, %v418
      %v420 = vrot.slane %v419, 2
      %v421 = vadd.f32 %v419, %v420
      %v422 = vrot.slane %v421, 1
      %v423 = vadd.f32 %v421, %v422
      %424 = vst [vmem:[%s214] sm:$0x1] %v423
      %p425 = scmp.lt.s32.totalorder %s16, 1
      %s426 = scalar_select %p425, %s16, 1
      %s427 = smul.addr %s426, 2
      %s428 = smul.addr %s427, 4
      %s429 = scalar_lea.vmem %s2, %s428
      %p430 = scmp.lt.s32.totalorder %s16, 1
      %s431 = scalar_select %p430, %s16, 1
      %s432 = scalar_lea.vmem %s3, %s431
      %p433 = scmp.lt.s32.totalorder %s16, 1
      %s434 = scalar_select %p433, %s16, 1
      %s435 = scalar_lea.vmem %s4, %s434
      // Predicated region
      $region29: #{conv_batch_norm.2} parent=27 // pred_check
        %p436 = pneg %p81
      $region30: #{conv_batch_norm.2} parent=27 // pred_check_branch
        %438 = sbr.rel (%p436) target = $region32
      $region31: #{conv_batch_norm.2} parent=27 // pred_region
        _
      $region32: #{conv_batch_norm.2} parent=27 // pred_fallthru
        _
      // Predicated region
      $region33: #{conv_batch_norm.2} parent=27 // pred_check
        %p439 = pneg %p107
      $region34: #{conv_batch_norm.2} parent=27 // pred_check_branch
        %441 = sbr.rel (%p439) target = $region36
      $region35: #{conv_batch_norm.2} parent=27 // pred_region
        _
      $region36: #{conv_batch_norm.2} parent=27 // pred_fallthru
        _
      // Predicated region
      $region37: #{conv_batch_norm.2} parent=27 // pred_check
        %p442 = pneg %p133
      $region38: #{conv_batch_norm.2} parent=27 // pred_check_branch
        %444 = sbr.rel (%p442) target = $region40
      $region39: #{conv_batch_norm.2} parent=27 // pred_region
        _
      $region40: #{conv_batch_norm.2} parent=27 // pred_fallthru
        _
    $region28: #{conv_batch_norm.2} parent=5 // pred_fallthru
      _
    %p445 = scmp.le.s32.totalorder 2, %s11
    // Predicated region
    $region41: #{conv_batch_norm.2} parent=5 // pred_check
      %p446 = pneg %p445
    $region42: #{conv_batch_norm.2} parent=5 // pred_check_branch
      %448 = sbr.rel (%p446) target = $region44
    $region43: #{conv_batch_norm.2} parent=5 // pred_region
      %s449 = ssub.s32 %s11, 2
      // Predicated region
      $region45: #{conv_batch_norm.2} parent=43 // pred_check
        %p450 = pneg %p87
      $region46: #{conv_batch_norm.2} parent=43 // pred_check_branch
        %452 = sbr.rel (%p450) target = $region48
      $region47: #{conv_batch_norm.2} parent=43 // pred_region
        %p453 = scmp.lt.s32.totalorder %s17, 1
        %s454 = scalar_select %p453, %s17, 1
        %s455 = smul.addr %s454, 2
        %s456 = smul.addr %s455, 4
        %s457 = scalar_lea.vmem %s2, %s456
      $region48: #{conv_batch_norm.2} parent=43 // pred_fallthru
        _
      // Predicated region
      $region49: #{conv_batch_norm.2} parent=43 // pred_check
        %p458 = pneg %p113
      $region50: #{conv_batch_norm.2} parent=43 // pred_check_branch
        %460 = sbr.rel (%p458) target = $region52
      $region51: #{conv_batch_norm.2} parent=43 // pred_region
        %p461 = scmp.lt.s32.totalorder %s17, 1
        %s462 = scalar_select %p461, %s17, 1
        %s463 = scalar_lea.vmem %s3, %s462
      $region52: #{conv_batch_norm.2} parent=43 // pred_fallthru
        _
      // Predicated region
      $region53: #{conv_batch_norm.2} parent=43 // pred_check
        %p464 = pneg %p139
      $region54: #{conv_batch_norm.2} parent=43 // pred_check_branch
        %466 = sbr.rel (%p464) target = $region56
      $region55: #{conv_batch_norm.2} parent=43 // pred_region
        %p467 = scmp.lt.s32.totalorder %s17, 1
        %s468 = scalar_select %p467, %s17, 1
        %s469 = scalar_lea.vmem %s4, %s468
      $region56: #{conv_batch_norm.2} parent=43 // pred_fallthru
        _
    $region44: #{conv_batch_norm.2} parent=5 // pred_fallthru
      _
  $region6: #{conv_batch_norm.2} parent=0 // loop_footer
    %s15 = sadd.s32 1, %s11
  $region7: #{conv_batch_norm.2} parent=0 // loop_footer_branch
    %10 = sbr.rel target = $region3
  $region8: #{conv_batch_norm.2} parent=0 // loop_exit
    _

// kernel: conv_batch_norm.3
$region0: #{conv_batch_norm.3}
  #allocation0 [shape = 'u32[]', space=smem, size = 0x4, offset = 0x4, fixed_abs, tag = 'smem constant byte address 0x4 - core index']
  #allocation1 [shape = 'u32[144,128]{1,0:T(1,128)}', space=vmem, size = 0x12000, scoped, tag = 'internal scratch']
  %s0 = inlined_call_operand.vmem [shape: bf16[2,16,128], index: 0, kind: input, shape index: {}]
  %s1 = inlined_call_operand.vmem [shape: f32[2,1,128], index: 1, kind: input, shape index: {}]
  %s2 = inlined_call_operand.vmem [shape: f32[2,1,128], index: 2, kind: input, shape index: {}]
  %s3 = inlined_call_operand.vmem [shape: f32[128,128], index: 3, kind: input, shape index: {}]
  %s4 = inlined_call_operand.vmem [shape: f32[1,128], index: 4, kind: input, shape index: {}]
  %s5 = inlined_call_operand.vmem [shape: f32[1,128], index: 5, kind: input, shape index: {}]
  %s6 = inlined_call_operand.hbm [shape: f32[2,8,16,16], index: 6, kind: output, shape index: {}]
  %s7 = sld [smem:[#allocation0]]
  $region57: #{conv_batch_norm.3} parent=0
    _
  %s9 = ssub.s32 1, %s7
  %s10 = scalar_select 0, %s9, %s7
  $region1: #{conv_batch_norm.3} parent=0
    #allocation2 [shape = 'u8[131072]{0}', space=vmem, size = 0x20000, scoped, tag = 'output window, operand 0']
    #allocation3 [shape = 's32[2]{0}', space=sflag, size = 0x8, scoped, tag = 'scoped memory for conv_batch_norm.3']
    %11 = vsyncpa [#allocation3], 0
    %s12 = scalar_lea.sflag [#allocation3], 1
    %13 = vsyncpa %s12, 0
    loop: start=0, step=1, limit=4
    $region2: #{conv_batch_norm.3} parent=1 // loop_pre_header
      _
    $region3: #{conv_batch_norm.3} parent=1 // loop_header
      %s15 = sphi 0, %s19
      %p16 = scmp.ge.s32.totalorder %s15, 4
      %s25 = sphi 0, %s27
      %s28 = sphi 0, %s25
      %s29 = sphi 0, %s28
      %s45 = sphi 0, %s29
      %s49 = sphi 0, %s49
      %s51 = sphi 0, %s49
      %s52 = sphi 0, %s51
      %s66 = sphi 0, %s52
      %s70 = sphi 0, %s70
      %s72 = sphi 0, %s70
      %s73 = sphi 0, %s72
      %s87 = sphi 0, %s73
      %s91 = sphi 0, %s91
      %s93 = sphi 0, %s91
      %s94 = sphi 0, %s93
      %s108 = sphi 0, %s94
      %s112 = sphi 0, %s112
      %s114 = sphi 0, %s112
      %s115 = sphi 0, %s114
      %s129 = sphi 0, %s115
      %s133 = sphi 0, %s133
      %s135 = sphi 0, %s133
      %s136 = sphi 0, %s135
      %s150 = sphi 0, %s136
      %s156 = sphi 0, %s158
      %s159 = sphi 0, %s156
      %s160 = sphi 0, %s159
      %s176 = sphi 0, %s160
    $region4: #{conv_batch_norm.3} parent=1 // loop_header_branch
      %18 = sbr.rel (%p16) target = $region8
    $region5: #{conv_batch_norm.3} parent=1 // loop_body
      %s20 = ssub.s32 %s15, 1
      %s21 = ssub.s32 %s15, 2
      %s22 = sadd.s32 %s15, 1
      %s23 = ssub.s32 %s15, %s22
      %p24 = scmp.eq.s32.totalorder %s23, 0
      %s26 = sadd.s32 %s25, 1
      %s27 = scalar_select %p24, %s25, %s26
      %p30 = pneg %p24
      %p31 = scmp.eq.s32.totalorder %s15, 1
      %p32 = por %p30, %p31
      %p33 = scmp.ne.s32.totalorder %s25, %s28
      %p34 = scmp.eq.s32.totalorder %s15, 0
      %p35 = por %p33, %p34
      %p36 = scmp.ne.s32.totalorder %s25, %s28
      %p37 = scmp.eq.s32.totalorder %s20, 1
      %p38 = por %p36, %p37
      %p39 = scmp.ne.s32.totalorder %s28, %s29
      %p40 = scmp.eq.s32.totalorder %s20, 0
      %p41 = por %p39, %p40
      %p42 = scmp.ne.s32.totalorder %s28, %s29
      %p43 = scmp.eq.s32.totalorder %s21, 1
      %p44 = por %p42, %p43
      %p46 = scmp.ne.s32.totalorder %s29, %s45
      %p47 = scmp.eq.s32.totalorder %s21, 0
      %p48 = por %p46, %p47
      %s50 = sadd.s32 %s49, 1
      %p53 = scmp.eq.s32.totalorder %s15, 1
      %p54 = scmp.ne.s32.totalorder %s49, %s51
      %p55 = scmp.eq.s32.totalorder %s15, 0
      %p56 = por %p54, %p55
      %p57 = scmp.ne.s32.totalorder %s49, %s51
      %p58 = scmp.eq.s32.totalorder %s20, 1
      %p59 = por %p57, %p58
      %p60 = scmp.ne.s32.totalorder %s51, %s52
      %p61 = scmp.eq.s32.totalorder %s20, 0
      %p62 = por %p60, %p61
      %p63 = scmp.ne.s32.totalorder %s51, %s52
      %p64 = scmp.eq.s32.totalorder %s21, 1
      %p65 = por %p63, %p64
      %p67 = scmp.ne.s32.totalorder %s52, %s66
      %p68 = scmp.eq.s32.totalorder %s21, 0
      %p69 = por %p67, %p68
      %s71 = sadd.s32 %s70, 1
      %p74 = scmp.eq.s32.totalorder %s15, 1
      %p75 = scmp.ne.s32.totalorder %s70, %s72
      %p76 = scmp.eq.s32.totalorder %s15, 0
      %p77 = por %p75, %p76
      %p78 = scmp.ne.s32.totalorder %s70, %s72
      %p79 = scmp.eq.s32.totalorder %s20, 1
      %p80 = por %p78, %p79
      %p81 = scmp.ne.s32.totalorder %s72, %s73
      %p82 = scmp.eq.s32.totalorder %s20, 0
      %p83 = por %p81, %p82
      %p84 = scmp.ne.s32.totalorder %s72, %s73
      %p85 = scmp.eq.s32.totalorder %s21, 1
      %p86 = por %p84, %p85
      %p88 = scmp.ne.s32.totalorder %s73, %s87
      %p89 = scmp.eq.s32.totalorder %s21, 0
      %p90 = por %p88, %p89
      %s92 = sadd.s32 %s91, 1
      %p95 = scmp.eq.s32.totalorder %s15, 1
      %p96 = scmp.ne.s32.totalorder %s91, %s93
      %p97 = scmp.eq.s32.totalorder %s15, 0
      %p98 = por %p96, %p97
      %p99 = scmp.ne.s32.totalorder %s91, %s93
      %p100 = scmp.eq.s32.totalorder %s20, 1
      %p101 = por %p99, %p100
      %p102 = scmp.ne.s32.totalorder %s93, %s94
      %p103 = scmp.eq.s32.totalorder %s20, 0
      %p104 = por %p102, %p103
      %p105 = scmp.ne.s32.totalorder %s93, %s94
      %p106 = scmp.eq.s32.totalorder %s21, 1
      %p107 = por %p105, %p106
      %p109 = scmp.ne.s32.totalorder %s94, %s108
      %p110 = scmp.eq.s32.totalorder %s21, 0
      %p111 = por %p109, %p110
      %s113 = sadd.s32 %s112, 1
      %p116 = scmp.eq.s32.totalorder %s15, 1
      %p117 = scmp.ne.s32.totalorder %s112, %s114
      %p118 = scmp.eq.s32.totalorder %s15, 0
      %p119 = por %p117, %p118
      %p120 = scmp.ne.s32.totalorder %s112, %s114
      %p121 = scmp.eq.s32.totalorder %s20, 1
      %p122 = por %p120, %p121
      %p123 = scmp.ne.s32.totalorder %s114, %s115
      %p124 = scmp.eq.s32.totalorder %s20, 0
      %p125 = por %p123, %p124
      %p126 = scmp.ne.s32.totalorder %s114, %s115
      %p127 = scmp.eq.s32.totalorder %s21, 1
      %p128 = por %p126, %p127
      %p130 = scmp.ne.s32.totalorder %s115, %s129
      %p131 = scmp.eq.s32.totalorder %s21, 0
      %p132 = por %p130, %p131
      %s134 = sadd.s32 %s133, 1
      %p137 = scmp.eq.s32.totalorder %s15, 1
      %p138 = scmp.ne.s32.totalorder %s133, %s135
      %p139 = scmp.eq.s32.totalorder %s15, 0
      %p140 = por %p138, %p139
      %p141 = scmp.ne.s32.totalorder %s133, %s135
      %p142 = scmp.eq.s32.totalorder %s20, 1
      %p143 = por %p141, %p142
      %p144 = scmp.ne.s32.totalorder %s135, %s136
      %p145 = scmp.eq.s32.totalorder %s20, 0
      %p146 = por %p144, %p145
      %p147 = scmp.ne.s32.totalorder %s135, %s136
      %p148 = scmp.eq.s32.totalorder %s21, 1
      %p149 = por %p147, %p148
      %p151 = scmp.ne.s32.totalorder %s136, %s150
      %p152 = scmp.eq.s32.totalorder %s21, 0
      %p153 = por %p151, %p152
      %s154 = ssub.s32 %s15, %s22
      %p155 = scmp.eq.s32.totalorder %s154, 0
      %s157 = sadd.s32 %s156, 1
      %s158 = scalar_select %p155, %s156, %s157
      %p161 = pneg %p155
      %p162 = scmp.eq.s32.totalorder %s15, 1
      %p163 = por %p161, %p162
      %p164 = scmp.ne.s32.totalorder %s156, %s159
      %p165 = scmp.eq.s32.totalorder %s15, 0
      %p166 = por %p164, %p165
      %p167 = scmp.ne.s32.totalorder %s156, %s159
      %p168 = scmp.eq.s32.totalorder %s20, 1
      %p169 = por %p167, %p168
      %p170 = scmp.ne.s32.totalorder %s159, %s160
      %p171 = scmp.eq.s32.totalorder %s20, 0
      %p172 = por %p170, %p171
      %p173 = scmp.ne.s32.totalorder %s159, %s160
      %p174 = scmp.eq.s32.totalorder %s21, 1
      %p175 = por %p173, %p174
      %p177 = scmp.ne.s32.totalorder %s160, %s176
      %p178 = scmp.eq.s32.totalorder %s21, 0
      %p179 = por %p177, %p178
      %p180 = scmp.le.s32.totalorder 1, %s15
      %p181 = scmp.lt.s32.totalorder %s15, 3
      %p182 = pnand %p180, %p181
      %p183 = pneg %p182
      // Predicated region
      $region9: #{conv_batch_norm.3} parent=5 // pred_check
        _
      $region10: #{conv_batch_norm.3} parent=5 // pred_check_branch
        %185 = sbr.rel (%p182) target = $region12
      $region11: #{conv_batch_norm.3} parent=5 // pred_region
        %s186 = ssub.s32 %s15, 1
        // Predicated region
        $region13: #{conv_batch_norm.3} parent=11 // pred_check
          %p187 = pneg %p62
        $region14: #{conv_batch_norm.3} parent=11 // pred_check_branch
          %189 = sbr.rel (%p187) target = $region16
        $region15: #{conv_batch_norm.3} parent=11 // pred_region
          _
        $region16: #{conv_batch_norm.3} parent=11 // pred_fallthru
          _
        // Predicated region
        $region17: #{conv_batch_norm.3} parent=11 // pred_check
          %p190 = pneg %p83
        $region18: #{conv_batch_norm.3} parent=11 // pred_check_branch
          %192 = sbr.rel (%p190) target = $region20
        $region19: #{conv_batch_norm.3} parent=11 // pred_region
          _
        $region20: #{conv_batch_norm.3} parent=11 // pred_fallthru
          _
        // Predicated region
        $region21: #{conv_batch_norm.3} parent=11 // pred_check
          %p193 = pneg %p104
        $region22: #{conv_batch_norm.3} parent=11 // pred_check_branch
          %195 = sbr.rel (%p193) target = $region24
        $region23: #{conv_batch_norm.3} parent=11 // pred_region
          _
        $region24: #{conv_batch_norm.3} parent=11 // pred_fallthru
          _
        // Predicated region
        $region25: #{conv_batch_norm.3} parent=11 // pred_check
          %p196 = pneg %p125
        $region26: #{conv_batch_norm.3} parent=11 // pred_check_branch
          %198 = sbr.rel (%p196) target = $region28
        $region27: #{conv_batch_norm.3} parent=11 // pred_region
          _
        $region28: #{conv_batch_norm.3} parent=11 // pred_fallthru
          _
        // Predicated region
        $region29: #{conv_batch_norm.3} parent=11 // pred_check
          %p199 = pneg %p146
        $region30: #{conv_batch_norm.3} parent=11 // pred_check_branch
          %201 = sbr.rel (%p199) target = $region32
        $region31: #{conv_batch_norm.3} parent=11 // pred_region
          _
        $region32: #{conv_batch_norm.3} parent=11 // pred_fallthru
          _
      $region12: #{conv_batch_norm.3} parent=5 // pred_fallthru
        _
      %p202 = scmp.lt.s32.totalorder %s15, 2
      // Predicated region
      $region33: #{conv_batch_norm.3} parent=5 // pred_check
        %p203 = pneg %p202
      $region34: #{conv_batch_norm.3} parent=5 // pred_check_branch
        %205 = sbr.rel (%p203) target = $region36
      $region35: #{conv_batch_norm.3} parent=5 // pred_region
        // Predicated region
        $region37: #{conv_batch_norm.3} parent=35 // pred_check
          %p206 = pneg %p35
        $region38: #{conv_batch_norm.3} parent=35 // pred_check_branch
          %208 = sbr.rel (%p206) target = $region40
        $region39: #{conv_batch_norm.3} parent=35 // pred_region
          %p209 = scmp.lt.s32.totalorder %s15, 1
          %s210 = scalar_select %p209, %s15, 1
          %s211 = smul.addr %s210, 2
          %s212 = smul.addr %s211, 4
          %s213 = scalar_lea.vmem %s0, %s212
        $region40: #{conv_batch_norm.3} parent=35 // pred_fallthru
          _
      $region36: #{conv_batch_norm.3} parent=5 // pred_fallthru
        _
      %p214 = scmp.le.s32.totalorder 1, %s15
      %p215 = scmp.lt.s32.totalorder %s15, 3
      %p216 = pnand %p214, %p215
      %p217 = pneg %p216
      // Predicated region
      $region41: #{conv_batch_norm.3} parent=5 // pred_check
        _
      $region42: #{conv_batch_norm.3} parent=5 // pred_check_branch
        %219 = sbr.rel (%p216) target = $region44
      $region43: #{conv_batch_norm.3} parent=5 // pred_region
        %s220 = ssub.s32 %s15, 1
        %p221 = scmp.lt.s32.totalorder %s20, 1
        %s222 = scalar_select %p221, %s20, 1
        %s223 = smul.addr %s222, 2
        %s224 = smul.addr %s223, 4
        %s225 = scalar_lea.vmem %s0, %s224
        %p226 = pneg %p41
        %p227 = pneg %p38
        %p228 = pneg %p62
        %p229 = pneg %p59
        %p230 = pneg %p83
        %p231 = pneg %p80
        %p232 = pneg %p104
        %p233 = pneg %p101
        %p234 = pneg %p125
        %p235 = pneg %p122
        %p236 = pneg %p146
        %p237 = pneg %p143
        %p238 = pneg %p172
        %p239 = pneg %p169
        %s240 = sand.u32 %s159, 1
        %s241 = scalar_lea.sflag [#allocation3], %s240
        %s242 = sand.u32 %s159, 1
        %s243 = smul.addr %s242, 128
        %s244 = scalar_lea.vmem [#allocation2], %s243
        %p245 = scmp.lt.s32.totalorder %s20, 1
        %s246 = scalar_select %p245, %s20, 1
        %s247 = smul.addr %s246, 2
        %s248 = smul.addr %s247, 4
        %s249 = scalar_lea.vmem %s0, %s248
        %v250 = vld [vmem:[%s1] sm:$0x1]
        %v251 = vld [vmem:[%s1 + $0x1] sm:$0x1]
        %vm252 = vcmask 1040384
        %v253 = vsel %vm252, %v250, 0.0
        %v254 = vsel %vm252, %v251, 0.0
        %v255 = vadd.f32 %v253, %v254
        %v256 = vld [vmem:[%s2] sm:$0x1]
        %v257 = vld [vmem:[%s2 + $0x1] sm:$0x1]
        %v258 = vsel %vm252, %v256, 0.0
        %v259 = vsel %vm252, %v257, 0.0
        %v260 = vadd.f32 %v258, %v259
        %v261 = vld [vmem:[%s3] sm:$0xff]
        %v262 = vld [vmem:[%s3 + $0x8] sm:$0xff]
        %v263 = vld [vmem:[%s3 + $0x10] sm:$0xff]
        %v264 = vld [vmem:[%s3 + $0x18] sm:$0xff]
        %v265 = vld [vmem:[%s3 + $0x20] sm:$0xff]
        %v266 = vld [vmem:[%s3 + $0x28] sm:$0xff]
        %v267 = vld [vmem:[%s3 + $0x30] sm:$0xff]
        %v268 = vld [vmem:[%s3 + $0x38] sm:$0xff]
        %v269 = vld [vmem:[%s3 + $0x40] sm:$0xff]
        %v270 = vld [vmem:[%s3 + $0x48] sm:$0xff]
        %v271 = vld [vmem:[%s3 + $0x50] sm:$0xff]
        %v272 = vld [vmem:[%s3 + $0x58] sm:$0xff]
        %v273 = vld [vmem:[%s3 + $0x60] sm:$0xff]
        %v274 = vld [vmem:[%s3 + $0x68] sm:$0xff]
        %v275 = vld [vmem:[%s3 + $0x70] sm:$0xff]
        %v276 = vld [vmem:[%s3 + $0x78] sm:$0xff]
        %277 = vmatprep.subr.mxu0 0.0
        %278 = vmatpush1.msra.mxu0 %v276
        %279 = vmatprep.subr.mxu0 0.0
        %280 = vmatpush1.msra.mxu0 %v275
        %281 = vmatprep.subr.mxu0 0.0
        %282 = vmatpush1.msra.mxu0 %v274
        %283 = vmatprep.subr.mxu0 0.0
        %284 = vmatpush1.msra.mxu0 %v273
        %285 = vmatprep.subr.mxu0 0.0
        %286 = vmatpush1.msra.mxu0 %v272
        %287 = vmatprep.subr.mxu0 0.0
        %288 = vmatpush1.msra.mxu0 %v271
        %289 = vmatprep.subr.mxu0 0.0
        %290 = vmatpush1.msra.mxu0 %v270
        %291 = vmatprep.subr.mxu0 0.0
        %292 = vmatpush1.msra.mxu0 %v269
        %293 = vmatprep.subr.mxu0 0.0
        %294 = vmatpush1.msra.mxu0 %v268
        %295 = vmatprep.subr.mxu0 0.0
        %296 = vmatpush1.msra.mxu0 %v267
        %297 = vmatprep.subr.mxu0 0.0
        %298 = vmatpush1.msra.mxu0 %v266
        %299 = vmatprep.subr.mxu0 0.0
        %300 = vmatpush1.msra.mxu0 %v265
        %301 = vmatprep.subr.mxu0 0.0
        %302 = vmatpush1.msra.mxu0 %v264
        %303 = vmatprep.subr.mxu0 0.0
        %304 = vmatpush1.msra.mxu0 %v263
        %305 = vmatprep.subr.mxu0 0.0
        %306 = vmatpush1.msra.mxu0 %v262
        %307 = vmatprep.subr.mxu0 0.0
        %308 = vmatpush1.msra.mxu0 %v261
        %309 = vmatprep.subr.mxu0 0.0
        %310 = vmatpush2.msra.mxu0 0.0
        %311 = vmatprep.subr.mxu0 0.0
        %312 = vmatpush2.msra.mxu0 0.0
        %313 = vmatprep.subr.mxu0 0.0
        %314 = vmatpush2.msra.mxu0 0.0
        %315 = vmatprep.subr.mxu0 0.0
        %316 = vmatpush2.msra.mxu0 0.0
        %317 = vmatprep.subr.mxu0 0.0
        %318 = vmatpush2.msra.mxu0 0.0
        %319 = vmatprep.subr.mxu0 0.0
        %320 = vmatpush2.msra.mxu0 0.0
        %321 = vmatprep.subr.mxu0 0.0
        %322 = vmatpush2.msra.mxu0 0.0
        %323 = vmatprep.subr.mxu0 0.0
        %324 = vmatpush2.msra.mxu0 0.0
        %325 = vmatprep.subr.mxu0 0.0
        %326 = vmatpush2.msra.mxu0 0.0
        %327 = vmatprep.subr.mxu0 0.0
        %328 = vmatpush2.msra.mxu0 0.0
        %329 = vmatprep.subr.mxu0 0.0
        %330 = vmatpush2.msra.mxu0 0.0
        %331 = vmatprep.subr.mxu0 0.0
        %332 = vmatpush2.msra.mxu0 0.0
        %333 = vmatprep.subr.mxu0 0.0
        %334 = vmatpush2.msra.mxu0 0.0
        %335 = vmatprep.subr.mxu0 0.0
        %336 = vmatpush2.msra.mxu0 0.0
        %337 = vmatprep.subr.mxu0 0.0
        %338 = vmatpush2.msra.mxu0 0.0
        %339 = vmatprep.subr.mxu0 0.0
        %340 = vmatpush2.msra.mxu0 0.0
        %341 = vmatprep.mubr.f32.mxu0 0.0
        %342 = vmatmul.mubr.f32.gmra.mxu0 %v255
        %v343 = vpop.f32.mrf.mxu0
        %v344 = vadd.f32 0.0, %v343
        %v345 = vpop.f32.mrf.mxu0
        %346 = vdwg.mxu0
        %347 = vmatprep.subr.mxu0 0.0
        %348 = vmatpush1.msra.mxu0 %v276
        %349 = vmatprep.subr.mxu0 0.0
        %350 = vmatpush1.msra.mxu0 %v275
        %351 = vmatprep.subr.mxu0 0.0
        %352 = vmatpush1.msra.mxu0 %v274
        %353 = vmatprep.subr.mxu0 0.0
        %354 = vmatpush1.msra.mxu0 %v273
        %355 = vmatprep.subr.mxu0 0.0
        %356 = vmatpush1.msra.mxu0 %v272
        %357 = vmatprep.subr.mxu0 0.0
        %358 = vmatpush1.msra.mxu0 %v271
        %359 = vmatprep.subr.mxu0 0.0
        %360 = vmatpush1.msra.mxu0 %v270
        %361 = vmatprep.subr.mxu0 0.0
        %362 = vmatpush1.msra.mxu0 %v269
        %363 = vmatprep.subr.mxu0 0.0
        %364 = vmatpush1.msra.mxu0 %v268
        %365 = vmatprep.subr.mxu0 0.0
        %366 = vmatpush1.msra.mxu0 %v267
        %367 = vmatprep.subr.mxu0 0.0
        %368 = vmatpush1.msra.mxu0 %v266
        %369 = vmatprep.subr.mxu0 0.0
        %370 = vmatpush1.msra.mxu0 %v265
        %371 = vmatprep.subr.mxu0 0.0
        %372 = vmatpush1.msra.mxu0 %v264
        %373 = vmatprep.subr.mxu0 0.0
        %374 = vmatpush1.msra.mxu0 %v263
        %375 = vmatprep.subr.mxu0 0.0
        %376 = vmatpush1.msra.mxu0 %v262
        %377 = vmatprep.subr.mxu0 0.0
        %378 = vmatpush1.msra.mxu0 %v261
        %379 = vmatprep.subr.mxu0 0.0
        %380 = vmatpush2.msra.mxu0 0.0
        %381 = vmatprep.subr.mxu0 0.0
        %382 = vmatpush2.msra.mxu0 0.0
        %383 = vmatprep.subr.mxu0 0.0
        %384 = vmatpush2.msra.mxu0 0.0
        %385 = vmatprep.subr.mxu0 0.0
        %386 = vmatpush2.msra.mxu0 0.0
        %387 = vmatprep.subr.mxu0 0.0
        %388 = vmatpush2.msra.mxu0 0.0
        %389 = vmatprep.subr.mxu0 0.0
        %390 = vmatpush2.msra.mxu0 0.0
        %391 = vmatprep.subr.mxu0 0.0
        %392 = vmatpush2.msra.mxu0 0.0
        %393 = vmatprep.subr.mxu0 0.0
        %394 = vmatpush2.msra.mxu0 0.0
        %395 = vmatprep.subr.mxu0 0.0
        %396 = vmatpush2.msra.mxu0 0.0
        %397 = vmatprep.subr.mxu0 0.0
        %398 = vmatpush2.msra.mxu0 0.0
        %399 = vmatprep.subr.mxu0 0.0
        %400 = vmatpush2.msra.mxu0 0.0
        %401 = vmatprep.subr.mxu0 0.0
        %402 = vmatpush2.msra.mxu0 0.0
        %403 = vmatprep.subr.mxu0 0.0
        %404 = vmatpush2.msra.mxu0 0.0
        %405 = vmatprep.subr.mxu0 0.0
        %406 = vmatpush2.msra.mxu0 0.0
        %407 = vmatprep.subr.mxu0 0.0
        %408 = vmatpush2.msra.mxu0 0.0
        %409 = vmatprep.subr.mxu0 0.0
        %410 = vmatpush2.msra.mxu0 0.0
        %411 = vmatprep.mubr.f32.mxu0 0.0
        %412 = vmatmul.mubr.f32.gmra.mxu0 %v260
        %v413 = vpop.f32.mrf.mxu0
        %v414 = vadd.f32 0.0, %v413
        %v415 = vpop.f32.mrf.mxu0
        %416 = vdwg.mxu0
        %v417 = vmul.f32 %v344, 0.001953125
        %v418 = vmul.f32 %v414, 0.001953125
        %v419 = vmul.f32 %v417, %v417
        %v420 = vsub.f32 %v418, %v419
        %v421 = vmax.f32 %v420, 0.0
        %v422 = vadd.f32 %v421, 1e-05
        %v423 = vrsqrt.pop %v422
        %v424 = vld [vmem:[%s4] sm:$0x1]
        %v425 = vmul.f32 %v424, %v423
        %v426 = vld [vmem:[%s5] sm:$0x1]
        %v427 = vmul.f32 %v417, %v425
        %v428 = vsub.f32 %v426, %v427
        %v429 = vld [vmem:[%s249] sm:$0xf]
        %v430 = vld [vmem:[%s249 + $0x4] sm:$0xf]
        %v431 = vunpack.c.l.bf16 %v429
        %v432 = vunpack.c.l.bf16 %v430
        %v434 = vlaneseq
        %v435 = vshrl.u32 %v434, 7
        %v436 = vsub.s32 0, %v435
        %v437 = vrot.slane %v425, %v436
        %v439 = vmul.f32 %v431, %v437
        %v440 = vmul.f32 %v432, %v437
        %v442 = vlaneseq
        %v443 = vshrl.u32 %v442, 7
        %v444 = vsub.s32 0, %v443
        %v445 = vrot.slane %v428, %v444
        %v447 = vadd.f32 %v439, %v445
        %v448 = vadd.f32 %v440, %v445
        %v449 = vmax.f32 %v447, 0.0
        %v450 = vmax.f32 %v448, 0.0
        %vm451 = vcmask 130048
        %452 = vst.msk [vmem:[%s244] sm:$0xff] %vm451, %v449
        %453 = vst.msk [vmem:[%s244 + $0x8] sm:$0xff] %vm451, %v450
        %456 = vrot.lane.b32.xlu0 %v449, 112
        %v457 = vpop.permute.xlu0 %456
        %458 = vrot.lane.b32.xlu0 %v450, 112
        %v459 = vpop.permute.xlu0 %458
        %s462 = scalar_lea.vmem %s244, 16 [#allocation2]
        %463 = vst.msk [vmem:[%s462] sm:$0xff] %vm451, %v457
        %464 = vst.msk [vmem:[%s462 + $0x8] sm:$0xff] %vm451, %v459
        %465 = vrot.lane.b32.xlu0 %v449, 96
        %v466 = vpop.permute.xlu0 %465
        %467 = vrot.lane.b32.xlu0 %v450, 96
        %v468 = vpop.permute.xlu0 %467
        %s471 = scalar_lea.vmem %s244, 32 [#allocation2]
        %472 = vst.msk [vmem:[%s471] sm:$0xff] %vm451, %v466
        %473 = vst.msk [vmem:[%s471 + $0x8] sm:$0xff] %vm451, %v468
        %474 = vrot.lane.b32.xlu0 %v449, 80
        %v475 = vpop.permute.xlu0 %474
        %476 = vrot.lane.b32.xlu0 %v450, 80
        %v477 = vpop.permute.xlu0 %476
        %s480 = scalar_lea.vmem %s244, 48 [#allocation2]
        %481 = vst.msk [vmem:[%s480] sm:$0xff] %vm451, %v475
        %482 = vst.msk [vmem:[%s480 + $0x8] sm:$0xff] %vm451, %v477
        %483 = vrot.lane.b32.xlu0 %v449, 64
        %v484 = vpop.permute.xlu0 %483
        %485 = vrot.lane.b32.xlu0 %v450, 64
        %v486 = vpop.permute.xlu0 %485
        %s489 = scalar_lea.vmem %s244, 64 [#allocation2]
        %490 = vst.msk [vmem:[%s489] sm:$0xff] %vm451, %v484
        %491 = vst.msk [vmem:[%s489 + $0x8] sm:$0xff] %vm451, %v486
        %492 = vrot.lane.b32.xlu0 %v449, 48
        %v493 = vpop.permute.xlu0 %492
        %494 = vrot.lane.b32.xlu0 %v450, 48
        %v495 = vpop.permute.xlu0 %494
        %s498 = scalar_lea.vmem %s244, 80 [#allocation2]
        %499 = vst.msk [vmem:[%s498] sm:$0xff] %vm451, %v493
        %500 = vst.msk [vmem:[%s498 + $0x8] sm:$0xff] %vm451, %v495
        %501 = vrot.lane.b32.xlu0 %v449, 32
        %v502 = vpop.permute.xlu0 %501
        %503 = vrot.lane.b32.xlu0 %v450, 32
        %v504 = vpop.permute.xlu0 %503
        %s507 = scalar_lea.vmem %s244, 96 [#allocation2]
        %508 = vst.msk [vmem:[%s507] sm:$0xff] %vm451, %v502
        %509 = vst.msk [vmem:[%s507 + $0x8] sm:$0xff] %vm451, %v504
        %510 = vrot.lane.b32.xlu0 %v449, 16
        %v511 = vpop.permute.xlu0 %510
        %512 = vrot.lane.b32.xlu0 %v450, 16
        %v513 = vpop.permute.xlu0 %512
        %s516 = scalar_lea.vmem %s244, 112 [#allocation2]
        %517 = vst.msk [vmem:[%s516] sm:$0xff] %vm451, %v511
        %518 = vst.msk [vmem:[%s516 + $0x8] sm:$0xff] %vm451, %v513
        %s519 = sand.u32 %s159, 1
        %s520 = scalar_lea.sflag [#allocation3], %s519
        %s521 = sand.u32 %s159, 1
        %s522 = smul.addr %s521, 128
        %s523 = scalar_lea.vmem [#allocation2], %s522
        // Predicated region
        $region45: #{conv_batch_norm.3} parent=43 // pred_check
          %p524 = pneg %p169
        $region46: #{conv_batch_norm.3} parent=43 // pred_check_branch
          %526 = sbr.rel (%p524) target = $region48
        $region47: #{conv_batch_norm.3} parent=43 // pred_region
          %s528 = ssub.s32 2048, 2048
          %529 = vsyncadd %s520, %s528
          %s530 = smul.addr %s20, 16
          %s531 = smul.addr %s530, 128
          %s532 = scalar_lea.hbm %s6, %s531
          %s533 = sshll.u32 %s523, 4
          %s534 = int_to_ptr.vmem [resolvable:$true] %s533
          %539 = dma.vmem_to_hbm [thread:$0]  %s534, 2048, %s532, %s520, 128, 128, 8
        $region48: #{conv_batch_norm.3} parent=43 // pred_fallthru
          _
      $region44: #{conv_batch_norm.3} parent=5 // pred_fallthru
        _
      %p540 = scmp.le.s32.totalorder 2, %s15
      // Predicated region
      $region49: #{conv_batch_norm.3} parent=5 // pred_check
        %p541 = pneg %p540
      $region50: #{conv_batch_norm.3} parent=5 // pred_check_branch
        %543 = sbr.rel (%p541) target = $region52
      $region51: #{conv_batch_norm.3} parent=5 // pred_region
        %s544 = ssub.s32 %s15, 2
        // Predicated region
        $region53: #{conv_batch_norm.3} parent=51 // pred_check
          %p545 = pneg %p175
        $region54: #{conv_batch_norm.3} parent=51 // pred_check_branch
          %547 = sbr.rel (%p545) target = $region56
        $region55: #{conv_batch_norm.3} parent=51 // pred_region
          %s548 = sand.u32 %s160, 1
          %s549 = scalar_lea.sflag [#allocation3], %s548
          %s550 = sand.u32 %s160, 1
          %s551 = smul.addr %s550, 128
          %s552 = scalar_lea.vmem [#allocation2], %s551
          %553 = dma.done %s549, 2048
        $region56: #{conv_batch_norm.3} parent=51 // pred_fallthru
          _
      $region52: #{conv_batch_norm.3} parent=5 // pred_fallthru
        _
    $region6: #{conv_batch_norm.3} parent=1 // loop_footer
      %s19 = sadd.s32 1, %s15
    $region7: #{conv_batch_norm.3} parent=1 // loop_footer_branch
      %14 = sbr.rel target = $region3
    $region8: #{conv_batch_norm.3} parent=1 // loop_exit
      _
    %554 = vsyncpa [#allocation3], 1
    %s555 = scalar_lea.sflag [#allocation3], 1
    %556 = vsyncpa %s555, 1

</llo_original>
